<compile_context>
chip_gen: v6e
topology: v6e:2x2x1
jax: 0.10.0
libtpu: 0.0.40
codegen_flags: <defaults>
</compile_context>

<pallas_src>
import jax
import jax.numpy as jnp
import numpy as np
from jax.experimental import pallas as pl
from jax.experimental.pallas import tpu as pltpu


# Normalization constants of the torch module, indexed by OUTPUT channel
# (output order is [R, G, B]; output channel c reads input channel 2 - c).
_MEAN_OUT = np.array([103.53, 116.28, 123.675], dtype=np.float64)
_STD_OUT = np.array([57.375, 57.12, 58.395], dtype=np.float64)

# Forward:  out = (x - mean) / std  ==  x * (1/std) + (-mean/std)
_FWD_SCALE = tuple((1.0 / _STD_OUT).astype(np.float32).tolist())
_FWD_BIAS = tuple((-_MEAN_OUT / _STD_OUT).astype(np.float32).tolist())
# Inverse:  out = x * std + mean   (exactly as in torch)
_INV_SCALE = tuple(_STD_OUT.astype(np.float32).tolist())
_INV_BIAS = tuple(_MEAN_OUT.astype(np.float32).tolist())


def _make_affine_kernel(scales, biases):
    """Kernel: out = x * scale[c] + bias[c], c = output-channel grid index."""
    s0, s1, s2 = (float(v) for v in scales)
    b0, b1, b2 = (float(v) for v in biases)

    def kernel(x_ref, o_ref):
        c = pl.program_id(1)  # output channel (0=R, 1=G, 2=B)
        scale = jnp.where(c == 0, s0, jnp.where(c == 1, s1, s2))
        bias = jnp.where(c == 0, b0, jnp.where(c == 1, b1, b2))
        o_ref[...] = x_ref[...] * scale + bias

    return kernel


def _round_up(x, m):
    return ((x + m - 1) // m) * m


def process(ten_input, inverse=False, *, block_rows=4096):
    """Pallas equivalent of Process.forward. ten_input: f32[N, 3, H, W]."""
    n, c, h, w = ten_input.shape
    assert c == 3, "Process expects 3 input channels (BGR)."

    scales, biases = (_INV_SCALE, _INV_BIAS) if inverse else (_FWD_SCALE, _FWD_BIAS)
    kernel = _make_affine_kernel(scales, biases)

    # Lane-dense layout: flatten spatial to (rows, 128).
    s = h * w
    r = pl.cdiv(s, 128)                       # rows of 128 lanes
    tr = min(int(block_rows), _round_up(r, 8))  # block rows (multiple of 8)
    num_tiles = pl.cdiv(r, tr)
    r_pad = num_tiles * tr
    s_pad = r_pad * 128

    x = ten_input.reshape(n, 3, s)
    if s_pad != s:
        x = jnp.pad(x, ((0, 0), (0, 0), (0, s_pad - s)))
    x = x.reshape(n, 3, r_pad, 128)

    out = pl.pallas_call(
        kernel,
        out_shape=jax.ShapeDtypeStruct((n, 3, r_pad, 128), ten_input.dtype),
        grid=(n, 3, num_tiles),
        in_specs=[
            # Output channel `cc` reads input channel 2 - cc (BGR -> RGB flip).
            pl.BlockSpec((1, 1, tr, 128), lambda b, cc, i: (b, 2 - cc, i, 0)),
        ],
        out_specs=pl.BlockSpec((1, 1, tr, 128), lambda b, cc, i: (b, cc, i, 0)),
        compiler_params=pltpu.CompilerParams(
            dimension_semantics=("parallel", "parallel", "parallel")
        ),
    )(x)

    out = out.reshape(n, 3, s_pad)
    if s_pad != s:
        out = out[:, :, :s]
    return out.reshape(n, 3, h, w)


def _process_ref(x, inverse=False):
    """Pure-JAX reference mirroring the PyTorch code exactly."""
    if not inverse:
        blue = (x[:, 0:1] - 123.675) / 58.395
        green = (x[:, 1:2] - 116.28) / 57.12
        red = (x[:, 2:3] - 103.53) / 57.375
    else:
        blue = x[:, 0:1] * 58.395 + 123.675
        green = x[:, 1:2] * 57.12 + 116.28
        red = x[:, 2:3] * 57.375 + 103.53
    return jnp.concatenate([red, green, blue], axis=1)


if __name__ == "__main__":
    key = jax.random.PRNGKey(0)
    # Small, module-consistent shape: batch=2, channels=3 (BGR), 16x16 spatial.
    x = jax.random.uniform(key, (2, 3, 16, 16), dtype=jnp.float32) * 255.0

    out_fwd = jax.block_until_ready(process(x, inverse=False))
    out_inv = jax.block_until_ready(process(x, inverse=True))

    ref_fwd = _process_ref(x, inverse=False)
    ref_inv = _process_ref(x, inverse=True)

    # Forward folds the divide into multiply-by-reciprocal (~1 ulp difference).
    np.testing.assert_allclose(np.asarray(out_fwd), np.asarray(ref_fwd),
                               rtol=2e-5, atol=1e-4)
    # Inverse uses the exact same mul+add ordering as torch.
    np.testing.assert_allclose(np.asarray(out_inv), np.asarray(ref_inv),
                               rtol=1e-6, atol=1e-3)

    # Exercise the padded / multi-tile path (spatial not a multiple of 128).
    x2 = jax.random.uniform(jax.random.PRNGKey(1), (1, 3, 40, 40),
                            dtype=jnp.float32) * 255.0
    out2_fwd = jax.block_until_ready(process(x2, inverse=False, block_rows=8))
    out2_inv = jax.block_until_ready(process(x2, inverse=True, block_rows=8))
    np.testing.assert_allclose(np.asarray(out2_fwd),
                               np.asarray(_process_ref(x2, inverse=False)),
                               rtol=2e-5, atol=1e-4)
    np.testing.assert_allclose(np.asarray(out2_inv),
                               np.asarray(_process_ref(x2, inverse=True)),
                               rtol=1e-6, atol=1e-3)

    print("KERNEL_OK")
</pallas_src>

<mosaic_0001>
module attributes {stable_mosaic.version = 11 : i64} {
  func.func @kernel(%arg0: i32, %arg1: i32, %arg2: i32, %arg3: memref<1x1x8x128xf32, #tpu.memory_space<vmem>>, %arg4: memref<1x1x8x128xf32, #tpu.memory_space<vmem>>) attributes {dimension_semantics = [#tpu.dimension_semantics<parallel>, #tpu.dimension_semantics<parallel>, #tpu.dimension_semantics<parallel>], iteration_bounds = array<i64: 2, 3, 1>, scalar_prefetch = 0 : i64, scratch_operands = 0 : i64, tpu.core_type = #tpu.core_type<tc>, window_params = [{transform_indices = @transform_0, window_bounds = array<i64: 1, 1, 8, 128>}, {transform_indices = @transform_1, window_bounds = array<i64: 1, 1, 8, 128>}]} {
    %c0_i32 = arith.constant 0 : i32
    %0 = arith.cmpi eq, %arg1, %c0_i32 : i32
    %c1_i32 = arith.constant 1 : i32
    %1 = arith.cmpi eq, %arg1, %c1_i32 : i32
    %cst = arith.constant 0.0175070036 : f32
    %cst_0 = arith.constant 0.0171247534 : f32
    %2 = arith.select %1, %cst, %cst_0 : f32
    %cst_1 = arith.constant 0.0174291935 : f32
    %3 = arith.select %0, %cst_1, %2 : f32
    %c0_i32_2 = arith.constant 0 : i32
    %4 = arith.cmpi eq, %arg1, %c0_i32_2 : i32
    %c1_i32_3 = arith.constant 1 : i32
    %5 = arith.cmpi eq, %arg1, %c1_i32_3 : i32
    %cst_4 = arith.constant -2.03571439 : f32
    %cst_5 = arith.constant -2.11790395 : f32
    %6 = arith.select %5, %cst_4, %cst_5 : f32
    %cst_6 = arith.constant -1.80444443 : f32
    %7 = arith.select %4, %cst_6, %6 : f32
    %c0 = arith.constant 0 : index
    %c0_7 = arith.constant 0 : index
    %c0_8 = arith.constant 0 : index
    %c0_9 = arith.constant 0 : index
    %8 = vector.load %arg3[%c0, %c0_7, %c0_8, %c0_9] : memref<1x1x8x128xf32, #tpu.memory_space<vmem>>, vector<1x1x8x128xf32>
    %9 = vector.broadcast %3 : f32 to vector<1x1x8x128xf32>
    %10 = arith.mulf %8, %9 : vector<1x1x8x128xf32>
    %11 = vector.broadcast %7 : f32 to vector<1x1x8x128xf32>
    %12 = arith.addf %10, %11 : vector<1x1x8x128xf32>
    %c0_10 = arith.constant 0 : index
    %c0_11 = arith.constant 0 : index
    %c0_12 = arith.constant 0 : index
    %c0_13 = arith.constant 0 : index
    %13 = vector.load %arg4[%c0_10, %c0_11, %c0_12, %c0_13] : memref<1x1x8x128xf32, #tpu.memory_space<vmem>>, vector<1x1x8x128xf32>
    tpu.vector_store %arg4[%c0_10, %c0_11, %c0_12, %c0_13], %12 {strides = array<i32>} : memref<1x1x8x128xf32, #tpu.memory_space<vmem>>, vector<1x1x8x128xf32>,
    return
  }
  func.func @transform_0(%arg0: i32, %arg1: i32, %arg2: i32) -> (i32, i32, i32, i32) {
    %c2_i32 = arith.constant 2 : i32
    %0 = arith.subi %c2_i32, %arg1 : i32
    %c0_i32 = arith.constant 0 : i32
    %c0_i32_0 = arith.constant 0 : i32
    return %arg0, %0, %arg2, %c0_i32 : i32, i32, i32, i32
  }
  func.func @transform_1(%arg0: i32, %arg1: i32, %arg2: i32) -> (i32, i32, i32, i32) {
    %c0_i32 = arith.constant 0 : i32
    %c0_i32_0 = arith.constant 0 : i32
    return %arg0, %arg1, %arg2, %c0_i32 : i32, i32, i32, i32
  }
}

</mosaic_0001>

<llo_original>
// kernel: tpu_custom_call.1
$region0: #{tpu_custom_call.1}
  #allocation0 [shape = 'u32[]', space=smem, size = 0x4, offset = 0x4, fixed_abs, tag = 'smem constant byte address 0x4 - core index']
  #allocation1 [shape = 'u32[144,128]{1,0:T(1,128)}', space=vmem, size = 0x12000, scoped, tag = 'internal scratch']
  %s0 = inlined_call_operand.hbm [shape: f32[2,3,8,128], index: 0, kind: input, shape index: {}]
  %s1 = inlined_call_operand.hbm [shape: f32[2,3,8,128], index: 1, kind: output, shape index: {}]
  %s2 = sld [smem:[#allocation0]]
  $region41: #{tpu_custom_call.1} parent=0
    _
  %s4 = ssub.s32 1, %s2
  %s5 = scalar_select 0, %s4, %s2
  $region1: #{tpu_custom_call.1} parent=0
    #allocation2 [shape = 'u8[8192]{0}', space=vmem, size = 0x2000, scoped, tag = 'input window, operand 0']
    #allocation3 [shape = 's32[2]{0}', space=sflag, size = 0x8, scoped, tag = 'scoped memory for tpu_custom_call.1']
    #allocation4 [shape = 's32[2]{0}', space=sflag, size = 0x8, scoped, tag = 'scoped memory for tpu_custom_call.1']
    #allocation5 [shape = 'u8[8192]{0}', space=vmem, size = 0x2000, scoped, tag = 'output window, operand 0']
    %6 = vsyncpa [#allocation3], 0
    %s7 = scalar_lea.sflag [#allocation3], 1
    %8 = vsyncpa %s7, 0
    %9 = vsyncpa [#allocation4], 0
    %s10 = scalar_lea.sflag [#allocation4], 1
    %11 = vsyncpa %s10, 0
    loop: start=0, step=1, limit=8
    $region2: #{tpu_custom_call.1} parent=1 // loop_pre_header
      _
    $region3: #{tpu_custom_call.1} parent=1 // loop_header
      %s13 = sphi 0, %s17
      %p14 = scmp.ge.s32.totalorder %s13, 8
      %s20 = sphi 0, %s39
      %s21 = sphi 0, %s35
      %s22 = sphi 0, %s31
      %s23 = sphi 0, %s20
      %s24 = sphi 0, %s21
      %s25 = sphi 0, %s22
      %s26 = sphi 0, %s23
      %s27 = sphi 0, %s24
      %s28 = sphi 0, %s25
      %s48 = sphi 0, %s50
      %s51 = sphi 0, %s48
      %s52 = sphi 0, %s51
      %s68 = sphi 0, %s52
      %s78 = sphi 0, %s80
      %s81 = sphi 0, %s78
      %s82 = sphi 0, %s81
      %s98 = sphi 0, %s82
    $region4: #{tpu_custom_call.1} parent=1 // loop_header_branch
      %16 = sbr.rel (%p14) target = $region8
    $region5: #{tpu_custom_call.1} parent=1 // loop_body
      %s18 = ssub.s32 %s13, 1
      %s19 = ssub.s32 %s13, 2
      %s29 = sadd.s32 1, %s22
      %p30 = scmp.ge.s32.totalorder %s29, 1
      %s31 = scalar_select %p30, 0, %s29
      %s32 = sadd.s32 1, %s21
      %s33 = scalar_select %p30, %s32, %s21
      %p34 = scmp.ge.s32.totalorder %s33, 3
      %s35 = scalar_select %p34, 0, %s33
      %s36 = sadd.s32 1, %s20
      %s37 = scalar_select %p34, %s36, %s20
      %p38 = scmp.ge.s32.totalorder %s37, 2
      %s39 = scalar_select %p38, 0, %s37
      %s40 = ssub.s32 2, %s21
      %s41 = ssub.s32 2, %s35
      %s42 = ssub.s32 %s20, %s39
      %s43 = ssub.s32 %s40, %s41
      %s44 = sor.u32 %s42, %s43
      %s45 = ssub.s32 %s22, %s31
      %s46 = sor.u32 %s44, %s45
      %p47 = scmp.eq.s32.totalorder %s46, 0
      %s49 = sadd.s32 %s48, 1
      %s50 = scalar_select %p47, %s48, %s49
      %p53 = pneg %p47
      %p54 = scmp.eq.s32.totalorder %s13, 5
      %p55 = por %p53, %p54
      %p56 = scmp.ne.s32.totalorder %s48, %s51
      %p57 = scmp.eq.s32.totalorder %s13, 0
      %p58 = por %p56, %p57
      %p59 = scmp.ne.s32.totalorder %s48, %s51
      %p60 = scmp.eq.s32.totalorder %s18, 5
      %p61 = por %p59, %p60
      %p62 = scmp.ne.s32.totalorder %s51, %s52
      %p63 = scmp.eq.s32.totalorder %s18, 0
      %p64 = por %p62, %p63
      %p65 = scmp.ne.s32.totalorder %s51, %s52
      %p66 = scmp.eq.s32.totalorder %s19, 5
      %p67 = por %p65, %p66
      %p69 = scmp.ne.s32.totalorder %s52, %s68
      %p70 = scmp.eq.s32.totalorder %s19, 0
      %p71 = por %p69, %p70
      %s72 = ssub.s32 %s20, %s39
      %s73 = ssub.s32 %s21, %s35
      %s74 = sor.u32 %s72, %s73
      %s75 = ssub.s32 %s22, %s31
      %s76 = sor.u32 %s74, %s75
      %p77 = scmp.eq.s32.totalorder %s76, 0
      %s79 = sadd.s32 %s78, 1
      %s80 = scalar_select %p77, %s78, %s79
      %p83 = pneg %p77
      %p84 = scmp.eq.s32.totalorder %s13, 5
      %p85 = por %p83, %p84
      %p86 = scmp.ne.s32.totalorder %s78, %s81
      %p87 = scmp.eq.s32.totalorder %s13, 0
      %p88 = por %p86, %p87
      %p89 = scmp.ne.s32.totalorder %s78, %s81
      %p90 = scmp.eq.s32.totalorder %s18, 5
      %p91 = por %p89, %p90
      %p92 = scmp.ne.s32.totalorder %s81, %s82
      %p93 = scmp.eq.s32.totalorder %s18, 0
      %p94 = por %p92, %p93
      %p95 = scmp.ne.s32.totalorder %s81, %s82
      %p96 = scmp.eq.s32.totalorder %s19, 5
      %p97 = por %p95, %p96
      %p99 = scmp.ne.s32.totalorder %s82, %s98
      %p100 = scmp.eq.s32.totalorder %s19, 0
      %p101 = por %p99, %p100
      %p102 = scmp.le.s32.totalorder 1, %s13
      %p103 = scmp.lt.s32.totalorder %s13, 7
      %p104 = pnand %p102, %p103
      %p105 = pneg %p104
      // Predicated region
      $region9: #{tpu_custom_call.1} parent=5 // pred_check
        _
      $region10: #{tpu_custom_call.1} parent=5 // pred_check_branch
        %107 = sbr.rel (%p104) target = $region12
      $region11: #{tpu_custom_call.1} parent=5 // pred_region
        %s108 = ssub.s32 %s13, 1
      $region12: #{tpu_custom_call.1} parent=5 // pred_fallthru
        _
      %p109 = scmp.lt.s32.totalorder %s13, 6
      // Predicated region
      $region13: #{tpu_custom_call.1} parent=5 // pred_check
        %p110 = pneg %p109
      $region14: #{tpu_custom_call.1} parent=5 // pred_check_branch
        %112 = sbr.rel (%p110) target = $region16
      $region15: #{tpu_custom_call.1} parent=5 // pred_region
        // Predicated region
        $region17: #{tpu_custom_call.1} parent=15 // pred_check
          %p113 = pneg %p58
        $region18: #{tpu_custom_call.1} parent=15 // pred_check_branch
          %115 = sbr.rel (%p113) target = $region20
        $region19: #{tpu_custom_call.1} parent=15 // pred_region
          %s116 = sand.u32 %s48, 1
          %s117 = scalar_lea.sflag [#allocation3], %s116
          %s118 = sand.u32 %s48, 1
          %s119 = smul.addr %s118, 8
          %s120 = scalar_lea.vmem [#allocation2], %s119
          %s121 = ssub.s32 2, %s21
          %s123 = ssub.s32 128, 128
          %124 = vsyncadd %s117, %s123
          %s125 = sadd.s32 %s22, %s121
          %s126 = smul.addr %s20, 3
          %s127 = sadd.s32 %s125, %s126
          %s128 = smul.addr %s127, 128
          %s129 = scalar_lea.hbm %s0, %s128
          %s131 = sshll.u32 %s120, 4
          %s132 = int_to_ptr.vmem [resolvable:$true] %s131
          %134 = dma.hbm_to_vmem [thread:$0]  %s129, 128, %s132, %s117
        $region20: #{tpu_custom_call.1} parent=15 // pred_fallthru
          _
      $region16: #{tpu_custom_call.1} parent=5 // pred_fallthru
        _
      %p135 = scmp.le.s32.totalorder 1, %s13
      %p136 = scmp.lt.s32.totalorder %s13, 7
      %p137 = pnand %p135, %p136
      %p138 = pneg %p137
      // Predicated region
      $region21: #{tpu_custom_call.1} parent=5 // pred_check
        _
      $region22: #{tpu_custom_call.1} parent=5 // pred_check_branch
        %140 = sbr.rel (%p137) target = $region24
      $region23: #{tpu_custom_call.1} parent=5 // pred_region
        %s141 = ssub.s32 %s13, 1
        %s142 = sand.u32 %s51, 1
        %s143 = scalar_lea.sflag [#allocation3], %s142
        %s144 = sand.u32 %s51, 1
        %s145 = smul.addr %s144, 8
        %s146 = scalar_lea.vmem [#allocation2], %s145
        // Predicated region
        $region25: #{tpu_custom_call.1} parent=23 // pred_check
          %p147 = pneg %p64
        $region26: #{tpu_custom_call.1} parent=23 // pred_check_branch
          %149 = sbr.rel (%p147) target = $region28
        $region27: #{tpu_custom_call.1} parent=23 // pred_region
          %150 = dma.done %s143, 128
        $region28: #{tpu_custom_call.1} parent=23 // pred_fallthru
          _
        %s151 = sand.u32 %s51, 1
        %s152 = scalar_lea.sflag [#allocation3], %s151
        %s153 = sand.u32 %s51, 1
        %s154 = smul.addr %s153, 8
        %s155 = scalar_lea.vmem [#allocation2], %s154
        %p156 = pneg %p64
        %p157 = pneg %p61
        %p158 = pneg %p94
        %p159 = pneg %p91
        %s160 = sand.u32 %s81, 1
        %s161 = scalar_lea.sflag [#allocation4], %s160
        %s162 = sand.u32 %s81, 1
        %s163 = smul.addr %s162, 8
        %s164 = scalar_lea.vmem [#allocation5], %s163
        %s165 = ssub.s32 2, %s24
        %p166 = scmp.eq.s32.totalorder %s24, 0
        %p167 = scmp.eq.s32.totalorder %s24, 1
        %s168 = scalar_select %p167, 0.017507004, 0.017124753
        %s169 = scalar_select %p166, 0.017429193, %s168
        %s170 = scalar_select %p167, -2.0357144, -2.117904
        %s171 = scalar_select %p166, -1.8044444, %s170
        %v172 = vld [vmem:[%s146] sm:$0xff]
        %v173 = vstv %s169
        %v174 = vmul.f32 %v172, %v173
        %v175 = vstv %s171
        %v176 = vadd.f32 %v174, %v175
        %177 = vst [vmem:[%s164] sm:$0xff] %v176
        %s178 = sand.u32 %s81, 1
        %s179 = scalar_lea.sflag [#allocation4], %s178
        %s180 = sand.u32 %s81, 1
        %s181 = smul.addr %s180, 8
        %s182 = scalar_lea.vmem [#allocation5], %s181
        // Predicated region
        $region29: #{tpu_custom_call.1} parent=23 // pred_check
          %p183 = pneg %p91
        $region30: #{tpu_custom_call.1} parent=23 // pred_check_branch
          %185 = sbr.rel (%p183) target = $region32
        $region31: #{tpu_custom_call.1} parent=23 // pred_region
          %s187 = ssub.s32 128, 128
          %188 = vsyncadd %s179, %s187
          %s189 = sadd.s32 %s25, %s24
          %s190 = smul.addr %s23, 3
          %s191 = sadd.s32 %s189, %s190
          %s192 = smul.addr %s191, 128
          %s193 = scalar_lea.hbm %s1, %s192
          %s195 = sshll.u32 %s182, 4
          %s196 = int_to_ptr.vmem [resolvable:$true] %s195
          %198 = dma.vmem_to_hbm [thread:$0]  %s196, 128, %s193, %s179
        $region32: #{tpu_custom_call.1} parent=23 // pred_fallthru
          _
      $region24: #{tpu_custom_call.1} parent=5 // pred_fallthru
        _
      %p199 = scmp.le.s32.totalorder 2, %s13
      // Predicated region
      $region33: #{tpu_custom_call.1} parent=5 // pred_check
        %p200 = pneg %p199
      $region34: #{tpu_custom_call.1} parent=5 // pred_check_branch
        %202 = sbr.rel (%p200) target = $region36
      $region35: #{tpu_custom_call.1} parent=5 // pred_region
        %s203 = ssub.s32 %s13, 2
        // Predicated region
        $region37: #{tpu_custom_call.1} parent=35 // pred_check
          %p204 = pneg %p97
        $region38: #{tpu_custom_call.1} parent=35 // pred_check_branch
          %206 = sbr.rel (%p204) target = $region40
        $region39: #{tpu_custom_call.1} parent=35 // pred_region
          %s207 = sand.u32 %s82, 1
          %s208 = scalar_lea.sflag [#allocation4], %s207
          %s209 = sand.u32 %s82, 1
          %s210 = smul.addr %s209, 8
          %s211 = scalar_lea.vmem [#allocation5], %s210
          %212 = dma.done %s208, 128
        $region40: #{tpu_custom_call.1} parent=35 // pred_fallthru
          _
      $region36: #{tpu_custom_call.1} parent=5 // pred_fallthru
        _
    $region6: #{tpu_custom_call.1} parent=1 // loop_footer
      %s17 = sadd.s32 1, %s13
    $region7: #{tpu_custom_call.1} parent=1 // loop_footer_branch
      %12 = sbr.rel target = $region3
    $region8: #{tpu_custom_call.1} parent=1 // loop_exit
      _
    %213 = vsyncpa [#allocation3], 1
    %s214 = scalar_lea.sflag [#allocation3], 1
    %215 = vsyncpa %s214, 1
    %216 = vsyncpa [#allocation4], 1
    %s217 = scalar_lea.sflag [#allocation4], 1
    %218 = vsyncpa %s217, 1

</llo_original>
